<compile_context>
chip_gen: v5e
topology: v5e:2x2
jax: 0.10.0
libtpu: 0.0.40
codegen_flags: <defaults>
</compile_context>

<pallas_src>
import functools

import jax
import jax.numpy as jnp
from jax import lax
from jax.experimental import pallas as pl
from jax.experimental.pallas import tpu as pltpu

_LEAKY_SLOPE = 0.01          # PyTorch nn.LeakyReLU default
_BN_EPS = 1e-5               # PyTorch nn.BatchNorm1d default
_VMEM_LIMIT_BYTES = 60 * 1024 * 1024   # > 16/32 MiB scoped defaults, <= v7x physical


def _linear_skip_block_kernel(x_ref, w_ref, params_ref, *rest,
                              inv_batch: float, apply_dropout: bool, tn: int):
    if apply_dropout:
        mask_ref, o_ref = rest
    else:
        (o_ref,) = rest

    # Lane-aligned slice of the resident x block == this tile's skip term
    # (replaces the duplicate x_skip input of the previous revision).
    start = pl.multiple_of(pl.program_id(0) * tn, 128)
    x_skip = x_ref[:, pl.ds(start, tn)]

    # ---- Linear (MXU): full contraction over n_input for one lane-dense tile.
    xm = x_ref[...]
    wm = w_ref[...]
    if xm.dtype != wm.dtype:                      # optional low-precision W path
        xm = xm.astype(wm.dtype)
    y = jnp.dot(xm, wm, preferred_element_type=jnp.float32)

    params = params_ref[...]                      # (3, tn): bias / gamma / beta
    y = y + params[0:1, :]

    # ---- LeakyReLU (negative_slope = 0.01).
    y = jnp.where(y >= 0.0, y, _LEAKY_SLOPE * y)

    # ---- Skip connection.
    y = x_skip + y

    # ---- Dropout: mask pre-scaled to {0, 1/(1-p)} -> single multiply.
    if apply_dropout:
        y = y * mask_ref[...]

    # ---- BatchNorm1d (training): centered two-pass batch statistics (biased var).
    mean = jnp.sum(y, axis=0, keepdims=True) * inv_batch
    centered = y - mean
    var = jnp.sum(centered * centered, axis=0, keepdims=True) * inv_batch
    scale = params[1:2, :] * lax.rsqrt(var + _BN_EPS)     # gamma folded in
    o_ref[...] = centered * scale + params[2:3, :]         # + beta: single FMA


def _pick_tile_n(n, tile_cap):
    """Largest lane-aligned tile (<= tile_cap) dividing n while keeping grid >= 2."""
    if n % 128 != 0:
        return n                                  # one full-width tile (grid = 1)
    best = 128
    for t in range(128, min(tile_cap, n) + 1, 128):
        if n % t == 0 and n // t >= 2:
            best = t
    return best


def linear_skip_block(x, w, b, gamma, beta, *, dropout_mask=None,
                      tile_n=512, w_dtype=None):
    """Training-mode forward of Linear_skip_block.

    x:            (B, N) float32
    w:            (N, N) float32  -- transposed PyTorch fc.weight (fc.weight.T)
    b/gamma/beta: (N,)
    dropout_mask: (B, N) pre-scaled mask in {0, 1/(1-p)}, or None for p == 0
    w_dtype:      optional low-precision dtype (e.g. jnp.bfloat16) for the matmul
                  weight stream; default keeps everything in f32.
    """
    B, N = x.shape
    assert w.shape == (N, N), "Linear_skip_block uses a square n_input x n_input fc"

    tn = _pick_tile_n(N, tile_n)
    grid = (N // tn,)
    apply_dropout = dropout_mask is not None

    x = x.astype(jnp.float32)
    w_in = w.astype(jnp.float32) if w_dtype is None else w.astype(w_dtype)
    params = jnp.stack([b, gamma, beta]).astype(jnp.float32)       # (3, N)

    kernel = functools.partial(_linear_skip_block_kernel,
                               inv_batch=1.0 / B,
                               apply_dropout=apply_dropout,
                               tn=tn)

    # Deeper W pipeline only pays off when per-step compute is short (small B)
    # and there are enough grid steps to keep the extra buffer in flight.
    w_buffers = 3 if (B <= 128 and grid[0] >= 3) else None

    def run(custom_buffering):
        def spec(shape, index_map, buffers=None):
            if custom_buffering and buffers is not None:
                return pl.BlockSpec(shape, index_map,
                                    pipeline_mode=pl.Buffered(buffers))
            return pl.BlockSpec(shape, index_map)

        in_specs = [
            # x: whole (B, N); constant block index -> fetched once, single buffer.
            spec((B, N), lambda j: (0, 0), buffers=1),
            # W: (N, tn) column tile per grid step (the dominant HBM stream).
            spec((N, tn), lambda j: (0, j), buffers=w_buffers),
            # bias / gamma / beta packed into one small tile.
            spec((3, tn), lambda j: (0, j)),
        ]
        inputs = [x, w_in, params]
        if apply_dropout:
            in_specs.append(spec((B, tn), lambda j: (0, j)))
            inputs.append(dropout_mask.astype(jnp.float32))

        return pl.pallas_call(
            kernel,
            out_shape=jax.ShapeDtypeStruct((B, N), jnp.float32),
            grid=grid,
            in_specs=in_specs,
            out_specs=pl.BlockSpec((B, tn), lambda j: (0, j)),
            compiler_params=pltpu.CompilerParams(
                dimension_semantics=("parallel",),
                vmem_limit_bytes=_VMEM_LIMIT_BYTES),
        )(*inputs)

    try:
        return run(True)
    except Exception:
        # pipeline_mode / pl.Buffered unavailable or rejected -> default buffering.
        return run(False)


def _reference(x, w, b, gamma, beta, mask):
    h = x @ w + b[None, :]
    h = jnp.where(h >= 0.0, h, _LEAKY_SLOPE * h)
    h = x + h
    if mask is not None:
        h = h * mask
    mean = jnp.mean(h, axis=0, keepdims=True)
    var = jnp.mean((h - mean) ** 2, axis=0, keepdims=True)
    return (h - mean) * lax.rsqrt(var + _BN_EPS) * gamma[None, :] + beta[None, :]


if __name__ == "__main__":
    # Small but lane-dense demo shapes: batch=8, n_input=256 (2 feature tiles of 128).
    B, N = 8, 256
    DROPOUT_RATE = 0.1

    key = jax.random.PRNGKey(0)
    kx, kw, kb, kmask = jax.random.split(key, 4)

    x = jax.random.normal(kx, (B, N), dtype=jnp.float32)

    # PyTorch-style uniform init bounds for nn.Linear(n_input, n_input).
    bound = 1.0 / (N ** 0.5)
    w = jax.random.uniform(kw, (N, N), minval=-bound, maxval=bound,
                           dtype=jnp.float32)            # = fc.weight.T
    b = jax.random.uniform(kb, (N,), minval=-bound, maxval=bound,
                           dtype=jnp.float32)            # = fc.bias
    gamma = jnp.ones((N,), dtype=jnp.float32)            # bn.weight
    beta = jnp.zeros((N,), dtype=jnp.float32)            # bn.bias

    # Dropout mask (training mode), pre-scaled to {0, 1/(1-p)}.
    keep = jax.random.bernoulli(kmask, p=1.0 - DROPOUT_RATE, shape=(B, N))
    mask = keep.astype(jnp.float32) / (1.0 - DROPOUT_RATE)

    out = linear_skip_block(x, w, b, gamma, beta, dropout_mask=mask)
    out = jax.block_until_ready(out)

    ref = _reference(x, w, b, gamma, beta, mask)

    assert out.shape == (B, N)
    assert bool(jnp.all(jnp.isfinite(out)))
    assert bool(jnp.allclose(out, ref, atol=5e-3, rtol=5e-3))
    print("KERNEL_OK")
</pallas_src>

<mosaic_0001>
module attributes {stable_mosaic.version = 11 : i64} {
  func.func @_linear_skip_block_kernel(%arg0: i32, %arg1: memref<8x256xf32, #tpu.memory_space<vmem>>, %arg2: memref<256x128xf32, #tpu.memory_space<vmem>>, %arg3: memref<3x128xf32, #tpu.memory_space<vmem>>, %arg4: memref<8x128xf32, #tpu.memory_space<vmem>>, %arg5: memref<8x128xf32, #tpu.memory_space<vmem>>) attributes {dimension_semantics = [#tpu.dimension_semantics<parallel>], iteration_bounds = array<i64: 2>, scalar_prefetch = 0 : i64, scratch_operands = 0 : i64, tpu.core_type = #tpu.core_type<tc>, window_params = [{pipeline_mode = #tpu.pipeline_mode<synchronous>, transform_indices = @transform_0, window_bounds = array<i64: 8, 256>}, {transform_indices = @transform_1, window_bounds = array<i64: 256, 128>}, {transform_indices = @transform_2, window_bounds = array<i64: 3, 128>}, {transform_indices = @transform_3, window_bounds = array<i64: 8, 128>}, {transform_indices = @transform_4, window_bounds = array<i64: 8, 128>}]} {
    %c128_i32 = arith.constant 128 : i32
    %0 = arith.muli %arg0, %c128_i32 : i32
    %1 = tpu.assume_multiple %0, 128 : i32
    %c0 = arith.constant 0 : index
    %2 = arith.index_cast %1 : i32 to index
    %3 = vector.load %arg1[%c0, %2] : memref<8x256xf32, #tpu.memory_space<vmem>>, vector<8x128xf32>
    %c0_0 = arith.constant 0 : index
    %c0_1 = arith.constant 0 : index
    %4 = vector.load %arg1[%c0_0, %c0_1] : memref<8x256xf32, #tpu.memory_space<vmem>>, vector<8x256xf32>
    %c0_2 = arith.constant 0 : index
    %c0_3 = arith.constant 0 : index
    %5 = vector.load %arg2[%c0_2, %c0_3] : memref<256x128xf32, #tpu.memory_space<vmem>>, vector<256x128xf32>
    %cst = arith.constant dense<0.000000e+00> : vector<8x128xf32>
    %6 = tpu.matmul %4, %5, %cst {dimension_numbers = #tpu.dot_dimension_numbers<[1], [0], [0], [1], [0, 0, 1, 1], [], []>} : vector<8x256xf32>, vector<256x128xf32>, vector<8x128xf32> -> vector<8x128xf32>
    %c0_4 = arith.constant 0 : index
    %c0_5 = arith.constant 0 : index
    %7 = vector.load %arg3[%c0_4, %c0_5] : memref<3x128xf32, #tpu.memory_space<vmem>>, vector<3x128xf32>
    %8 = vector.extract_strided_slice %7 {offsets = [0, 0], sizes = [1, 128], strides = [1, 1]} : vector<3x128xf32> to vector<1x128xf32>
    %9 = vector.broadcast %8 : vector<1x128xf32> to vector<8x128xf32>
    %10 = arith.addf %6, %9 : vector<8x128xf32>
    %cst_6 = arith.constant 0.000000e+00 : f32
    %11 = vector.broadcast %cst_6 : f32 to vector<8x128xf32>
    %12 = arith.cmpf oge, %10, %11 : vector<8x128xf32>
    %cst_7 = arith.constant 0.00999999977 : f32
    %13 = vector.broadcast %cst_7 : f32 to vector<8x128xf32>
    %14 = arith.mulf %13, %10 : vector<8x128xf32>
    %15 = arith.select %12, %10, %14 : vector<8x128xi1>, vector<8x128xf32>
    %16 = arith.addf %3, %15 : vector<8x128xf32>
    %c0_8 = arith.constant 0 : index
    %c0_9 = arith.constant 0 : index
    %17 = vector.load %arg4[%c0_8, %c0_9] : memref<8x128xf32, #tpu.memory_space<vmem>>, vector<8x128xf32>
    %18 = arith.mulf %16, %17 : vector<8x128xf32>
    %cst_10 = arith.constant dense<0.000000e+00> : vector<128xf32>
    %19 = vector.multi_reduction <add>, %18, %cst_10 [0] : vector<8x128xf32> to vector<128xf32>
    %20 = vector.shape_cast %19 : vector<128xf32> to vector<1x128xf32>
    %cst_11 = arith.constant 1.250000e-01 : f32
    %21 = vector.broadcast %cst_11 : f32 to vector<1x128xf32>
    %22 = arith.mulf %20, %21 : vector<1x128xf32>
    %23 = vector.broadcast %22 : vector<1x128xf32> to vector<8x128xf32>
    %24 = arith.subf %18, %23 : vector<8x128xf32>
    %25 = arith.mulf %24, %24 : vector<8x128xf32>
    %cst_12 = arith.constant dense<0.000000e+00> : vector<128xf32>
    %26 = vector.multi_reduction <add>, %25, %cst_12 [0] : vector<8x128xf32> to vector<128xf32>
    %27 = vector.shape_cast %26 : vector<128xf32> to vector<1x128xf32>
    %cst_13 = arith.constant 1.250000e-01 : f32
    %28 = vector.broadcast %cst_13 : f32 to vector<1x128xf32>
    %29 = arith.mulf %27, %28 : vector<1x128xf32>
    %30 = vector.extract_strided_slice %7 {offsets = [1, 0], sizes = [1, 128], strides = [1, 1]} : vector<3x128xf32> to vector<1x128xf32>
    %cst_14 = arith.constant 9.99999974E-6 : f32
    %31 = vector.broadcast %cst_14 : f32 to vector<1x128xf32>
    %32 = arith.addf %29, %31 : vector<1x128xf32>
    %33 = math.rsqrt %32 : vector<1x128xf32>
    %34 = arith.mulf %30, %33 : vector<1x128xf32>
    %35 = vector.broadcast %34 : vector<1x128xf32> to vector<8x128xf32>
    %36 = arith.mulf %24, %35 : vector<8x128xf32>
    %37 = vector.extract_strided_slice %7 {offsets = [2, 0], sizes = [1, 128], strides = [1, 1]} : vector<3x128xf32> to vector<1x128xf32>
    %38 = vector.broadcast %37 : vector<1x128xf32> to vector<8x128xf32>
    %39 = arith.addf %36, %38 : vector<8x128xf32>
    %c0_15 = arith.constant 0 : index
    %c0_16 = arith.constant 0 : index
    %40 = vector.load %arg5[%c0_15, %c0_16] : memref<8x128xf32, #tpu.memory_space<vmem>>, vector<8x128xf32>
    tpu.vector_store %arg5[%c0_15, %c0_16], %39 {strides = array<i32>} : memref<8x128xf32, #tpu.memory_space<vmem>>, vector<8x128xf32>,
    return
  }
  func.func @transform_0(%arg0: i32) -> (i32, i32) {
    %c0_i32 = arith.constant 0 : i32
    %c0_i32_0 = arith.constant 0 : i32
    %c0_i32_1 = arith.constant 0 : i32
    return %c0_i32, %c0_i32_0 : i32, i32
  }
  func.func @transform_1(%arg0: i32) -> (i32, i32) {
    %c0_i32 = arith.constant 0 : i32
    %c0_i32_0 = arith.constant 0 : i32
    return %c0_i32, %arg0 : i32, i32
  }
  func.func @transform_2(%arg0: i32) -> (i32, i32) {
    %c0_i32 = arith.constant 0 : i32
    %c0_i32_0 = arith.constant 0 : i32
    return %c0_i32, %arg0 : i32, i32
  }
  func.func @transform_3(%arg0: i32) -> (i32, i32) {
    %c0_i32 = arith.constant 0 : i32
    %c0_i32_0 = arith.constant 0 : i32
    return %c0_i32, %arg0 : i32, i32
  }
  func.func @transform_4(%arg0: i32) -> (i32, i32) {
    %c0_i32 = arith.constant 0 : i32
    %c0_i32_0 = arith.constant 0 : i32
    return %c0_i32, %arg0 : i32, i32
  }
}

module attributes {stable_mosaic.version = 11 : i64} {
  func.func @_linear_skip_block_kernel(%arg0: i32, %arg1: memref<8x256xf32, #tpu.memory_space<vmem>>, %arg2: memref<256x128xf32, #tpu.memory_space<vmem>>, %arg3: memref<3x128xf32, #tpu.memory_space<vmem>>, %arg4: memref<8x128xf32, #tpu.memory_space<vmem>>, %arg5: memref<8x128xf32, #tpu.memory_space<vmem>>) attributes {dimension_semantics = [#tpu.dimension_semantics<parallel>], iteration_bounds = array<i64: 2>, scalar_prefetch = 0 : i64, scratch_operands = 0 : i64, tpu.core_type = #tpu.core_type<tc>, window_params = [{pipeline_mode = #tpu.pipeline_mode<synchronous>, transform_indices = @transform_0, window_bounds = array<i64: 8, 256>}, {transform_indices = @transform_1, window_bounds = array<i64: 256, 128>}, {transform_indices = @transform_2, window_bounds = array<i64: 3, 128>}, {transform_indices = @transform_3, window_bounds = array<i64: 8, 128>}, {transform_indices = @transform_4, window_bounds = array<i64: 8, 128>}]} {
    %c128_i32 = arith.constant 128 : i32
    %0 = arith.muli %arg0, %c128_i32 : i32
    %1 = tpu.assume_multiple %0, 128 : i32
    %c0 = arith.constant 0 : index
    %2 = arith.index_cast %1 : i32 to index
    %3 = vector.load %arg1[%c0, %2] : memref<8x256xf32, #tpu.memory_space<vmem>>, vector<8x128xf32>
    %c0_0 = arith.constant 0 : index
    %c0_1 = arith.constant 0 : index
    %4 = vector.load %arg1[%c0_0, %c0_1] : memref<8x256xf32, #tpu.memory_space<vmem>>, vector<8x256xf32>
    %c0_2 = arith.constant 0 : index
    %c0_3 = arith.constant 0 : index
    %5 = vector.load %arg2[%c0_2, %c0_3] : memref<256x128xf32, #tpu.memory_space<vmem>>, vector<256x128xf32>
    %cst = arith.constant dense<0.000000e+00> : vector<8x128xf32>
    %6 = tpu.matmul %4, %5, %cst {dimension_numbers = #tpu.dot_dimension_numbers<[1], [0], [0], [1], [0, 0, 1, 1], [], []>} : vector<8x256xf32>, vector<256x128xf32>, vector<8x128xf32> -> vector<8x128xf32>
    %c0_4 = arith.constant 0 : index
    %c0_5 = arith.constant 0 : index
    %7 = vector.load %arg3[%c0_4, %c0_5] : memref<3x128xf32, #tpu.memory_space<vmem>>, vector<3x128xf32>
    %8 = vector.extract_strided_slice %7 {offsets = [0, 0], sizes = [1, 128], strides = [1, 1]} : vector<3x128xf32> to vector<1x128xf32>
    %9 = vector.broadcast %8 : vector<1x128xf32> to vector<8x128xf32>
    %10 = arith.addf %6, %9 : vector<8x128xf32>
    %cst_6 = arith.constant 0.000000e+00 : f32
    %11 = vector.broadcast %cst_6 : f32 to vector<8x128xf32>
    %12 = arith.cmpf oge, %10, %11 : vector<8x128xf32>
    %cst_7 = arith.constant 0.00999999977 : f32
    %13 = vector.broadcast %cst_7 : f32 to vector<8x128xf32>
    %14 = arith.mulf %13, %10 : vector<8x128xf32>
    %15 = arith.select %12, %10, %14 : vector<8x128xi1>, vector<8x128xf32>
    %16 = arith.addf %3, %15 : vector<8x128xf32>
    %c0_8 = arith.constant 0 : index
    %c0_9 = arith.constant 0 : index
    %17 = vector.load %arg4[%c0_8, %c0_9] : memref<8x128xf32, #tpu.memory_space<vmem>>, vector<8x128xf32>
    %18 = arith.mulf %16, %17 : vector<8x128xf32>
    %cst_10 = arith.constant dense<0.000000e+00> : vector<128xf32>
    %19 = vector.multi_reduction <add>, %18, %cst_10 [0] : vector<8x128xf32> to vector<128xf32>
    %20 = vector.shape_cast %19 : vector<128xf32> to vector<1x128xf32>
    %cst_11 = arith.constant 1.250000e-01 : f32
    %21 = vector.broadcast %cst_11 : f32 to vector<1x128xf32>
    %22 = arith.mulf %20, %21 : vector<1x128xf32>
    %23 = vector.broadcast %22 : vector<1x128xf32> to vector<8x128xf32>
    %24 = arith.subf %18, %23 : vector<8x128xf32>
    %25 = arith.mulf %24, %24 : vector<8x128xf32>
    %cst_12 = arith.constant dense<0.000000e+00> : vector<128xf32>
    %26 = vector.multi_reduction <add>, %25, %cst_12 [0] : vector<8x128xf32> to vector<128xf32>
    %27 = vector.shape_cast %26 : vector<128xf32> to vector<1x128xf32>
    %cst_13 = arith.constant 1.250000e-01 : f32
    %28 = vector.broadcast %cst_13 : f32 to vector<1x128xf32>
    %29 = arith.mulf %27, %28 : vector<1x128xf32>
    %30 = vector.extract_strided_slice %7 {offsets = [1, 0], sizes = [1, 128], strides = [1, 1]} : vector<3x128xf32> to vector<1x128xf32>
    %cst_14 = arith.constant 9.99999974E-6 : f32
    %31 = vector.broadcast %cst_14 : f32 to vector<1x128xf32>
    %32 = arith.addf %29, %31 : vector<1x128xf32>
    %33 = math.rsqrt %32 : vector<1x128xf32>
    %34 = arith.mulf %30, %33 : vector<1x128xf32>
    %35 = vector.broadcast %34 : vector<1x128xf32> to vector<8x128xf32>
    %36 = arith.mulf %24, %35 : vector<8x128xf32>
    %37 = vector.extract_strided_slice %7 {offsets = [2, 0], sizes = [1, 128], strides = [1, 1]} : vector<3x128xf32> to vector<1x128xf32>
    %38 = vector.broadcast %37 : vector<1x128xf32> to vector<8x128xf32>
    %39 = arith.addf %36, %38 : vector<8x128xf32>
    %c0_15 = arith.constant 0 : index
    %c0_16 = arith.constant 0 : index
    %40 = vector.load %arg5[%c0_15, %c0_16] : memref<8x128xf32, #tpu.memory_space<vmem>>, vector<8x128xf32>
    tpu.vector_store %arg5[%c0_15, %c0_16], %39 {strides = array<i32>} : memref<8x128xf32, #tpu.memory_space<vmem>>, vector<8x128xf32>,
    return
  }
  func.func @transform_0(%arg0: i32) -> (i32, i32) {
    %c0_i32 = arith.constant 0 : i32
    %c0_i32_0 = arith.constant 0 : i32
    %c0_i32_1 = arith.constant 0 : i32
    return %c0_i32, %c0_i32_0 : i32, i32
  }
  func.func @transform_1(%arg0: i32) -> (i32, i32) {
    %c0_i32 = arith.constant 0 : i32
    %c0_i32_0 = arith.constant 0 : i32
    return %c0_i32, %arg0 : i32, i32
  }
  func.func @transform_2(%arg0: i32) -> (i32, i32) {
    %c0_i32 = arith.constant 0 : i32
    %c0_i32_0 = arith.constant 0 : i32
    return %c0_i32, %arg0 : i32, i32
  }
  func.func @transform_3(%arg0: i32) -> (i32, i32) {
    %c0_i32 = arith.constant 0 : i32
    %c0_i32_0 = arith.constant 0 : i32
    return %c0_i32, %arg0 : i32, i32
  }
  func.func @transform_4(%arg0: i32) -> (i32, i32) {
    %c0_i32 = arith.constant 0 : i32
    %c0_i32_0 = arith.constant 0 : i32
    return %c0_i32, %arg0 : i32, i32
  }
}

</mosaic_0001>

<llo_original>
// kernel: tpu_custom_call.1
$region0: #{tpu_custom_call.1}
  #allocation0 [shape = 'u32[]', space=smem, size = 0x4, offset = 0x4, fixed_abs, tag = 'smem constant byte address 0x4 - core index']
  #allocation1 [shape = 'u32[72,128]{1,0:T(1,128)}', space=vmem, size = 0x9000, scoped, tag = 'internal scratch']
  %s0 = inlined_call_operand.hbm [shape: f32[8,256], index: 0, kind: input, shape index: {}]
  %s1 = inlined_call_operand.hbm [shape: f32[256,256], index: 1, kind: input, shape index: {}]
  %s2 = inlined_call_operand.hbm [shape: f32[3,256], index: 2, kind: input, shape index: {}]
  %s3 = inlined_call_operand.hbm [shape: f32[8,256], index: 3, kind: input, shape index: {}]
  %s4 = inlined_call_operand.hbm [shape: f32[8,256], index: 4, kind: output, shape index: {}]
  %s5 = sld [smem:[#allocation0]]
  $region65: #{tpu_custom_call.1} parent=0
    _
  %s7 = ssub.s32 1, %s5
  %s8 = scalar_select 0, %s7, %s5
  $region1: #{tpu_custom_call.1} parent=0
    #allocation2 [shape = 'u8[8192]{0}', space=vmem, size = 0x2000, scoped, tag = 'input window, operand 0, single buffered']
    #allocation3 [shape = 's32[2]{0}', space=sflag, size = 0x8, scoped, tag = 'scoped memory for tpu_custom_call.1']
    #allocation4 [shape = 's32[2]{0}', space=sflag, size = 0x8, scoped, tag = 'scoped memory for tpu_custom_call.1']
    #allocation5 [shape = 'u8[262144]{0}', space=vmem, size = 0x40000, scoped, tag = 'input window, operand 1']
    #allocation6 [shape = 's32[2]{0}', space=sflag, size = 0x8, scoped, tag = 'scoped memory for tpu_custom_call.1']
    #allocation7 [shape = 'u8[4096]{0}', space=vmem, size = 0x1000, scoped, tag = 'input window, operand 2']
    #allocation8 [shape = 'u8[8192]{0}', space=vmem, size = 0x2000, scoped, tag = 'input window, operand 3']
    #allocation9 [shape = 's32[2]{0}', space=sflag, size = 0x8, scoped, tag = 'scoped memory for tpu_custom_call.1']
    #allocation10 [shape = 'u8[8192]{0}', space=vmem, size = 0x2000, scoped, tag = 'output window, operand 0']
    %9 = vsyncpa [#allocation3], 0
    %10 = vsyncpa [#allocation6], 0
    %s11 = scalar_lea.sflag [#allocation6], 1
    %12 = vsyncpa %s11, 0
    %13 = vsyncpa [#allocation9], 0
    %s14 = scalar_lea.sflag [#allocation9], 1
    %15 = vsyncpa %s14, 0
    %16 = vsyncpa [#allocation4], 0
    %s17 = scalar_lea.sflag [#allocation4], 1
    %18 = vsyncpa %s17, 0
    loop: start=0, step=1, limit=4
    $region2: #{tpu_custom_call.1} parent=1 // loop_pre_header
      _
    $region3: #{tpu_custom_call.1} parent=1 // loop_header
      %s20 = sphi 0, %s24
      %p21 = scmp.ge.s32.totalorder %s20, 4
      %s28 = sphi 0, %s28
      %s30 = sphi 0, %s28
      %s31 = sphi 0, %s30
      %s45 = sphi 0, %s31
      %s51 = sphi 0, %s53
      %s54 = sphi 0, %s51
      %s55 = sphi 0, %s54
      %s71 = sphi 0, %s55
      %s77 = sphi 0, %s79
      %s80 = sphi 0, %s77
      %s81 = sphi 0, %s80
      %s97 = sphi 0, %s81
      %s103 = sphi 0, %s105
      %s106 = sphi 0, %s103
      %s107 = sphi 0, %s106
      %s123 = sphi 0, %s107
      %s129 = sphi 0, %s131
      %s132 = sphi 0, %s129
      %s133 = sphi 0, %s132
      %s149 = sphi 0, %s133
    $region4: #{tpu_custom_call.1} parent=1 // loop_header_branch
      %23 = sbr.rel (%p21) target = $region8
    $region5: #{tpu_custom_call.1} parent=1 // loop_body
      %s25 = ssub.s32 %s20, 1
      %s26 = ssub.s32 %s20, 2
      %s27 = sadd.s32 %s20, 1
      %s29 = sadd.s32 %s28, 1
      %p32 = scmp.eq.s32.totalorder %s20, 1
      %p33 = scmp.ne.s32.totalorder %s28, %s30
      %p34 = scmp.eq.s32.totalorder %s20, 0
      %p35 = por %p33, %p34
      %p36 = scmp.ne.s32.totalorder %s28, %s30
      %p37 = scmp.eq.s32.totalorder %s25, 1
      %p38 = por %p36, %p37
      %p39 = scmp.ne.s32.totalorder %s30, %s31
      %p40 = scmp.eq.s32.totalorder %s25, 0
      %p41 = por %p39, %p40
      %p42 = scmp.ne.s32.totalorder %s30, %s31
      %p43 = scmp.eq.s32.totalorder %s26, 1
      %p44 = por %p42, %p43
      %p46 = scmp.ne.s32.totalorder %s31, %s45
      %p47 = scmp.eq.s32.totalorder %s26, 0
      %p48 = por %p46, %p47
      %s49 = ssub.s32 %s20, %s27
      %p50 = scmp.eq.s32.totalorder %s49, 0
      %s52 = sadd.s32 %s51, 1
      %s53 = scalar_select %p50, %s51, %s52
      %p56 = pneg %p50
      %p57 = scmp.eq.s32.totalorder %s20, 1
      %p58 = por %p56, %p57
      %p59 = scmp.ne.s32.totalorder %s51, %s54
      %p60 = scmp.eq.s32.totalorder %s20, 0
      %p61 = por %p59, %p60
      %p62 = scmp.ne.s32.totalorder %s51, %s54
      %p63 = scmp.eq.s32.totalorder %s25, 1
      %p64 = por %p62, %p63
      %p65 = scmp.ne.s32.totalorder %s54, %s55
      %p66 = scmp.eq.s32.totalorder %s25, 0
      %p67 = por %p65, %p66
      %p68 = scmp.ne.s32.totalorder %s54, %s55
      %p69 = scmp.eq.s32.totalorder %s26, 1
      %p70 = por %p68, %p69
      %p72 = scmp.ne.s32.totalorder %s55, %s71
      %p73 = scmp.eq.s32.totalorder %s26, 0
      %p74 = por %p72, %p73
      %s75 = ssub.s32 %s20, %s27
      %p76 = scmp.eq.s32.totalorder %s75, 0
      %s78 = sadd.s32 %s77, 1
      %s79 = scalar_select %p76, %s77, %s78
      %p82 = pneg %p76
      %p83 = scmp.eq.s32.totalorder %s20, 1
      %p84 = por %p82, %p83
      %p85 = scmp.ne.s32.totalorder %s77, %s80
      %p86 = scmp.eq.s32.totalorder %s20, 0
      %p87 = por %p85, %p86
      %p88 = scmp.ne.s32.totalorder %s77, %s80
      %p89 = scmp.eq.s32.totalorder %s25, 1
      %p90 = por %p88, %p89
      %p91 = scmp.ne.s32.totalorder %s80, %s81
      %p92 = scmp.eq.s32.totalorder %s25, 0
      %p93 = por %p91, %p92
      %p94 = scmp.ne.s32.totalorder %s80, %s81
      %p95 = scmp.eq.s32.totalorder %s26, 1
      %p96 = por %p94, %p95
      %p98 = scmp.ne.s32.totalorder %s81, %s97
      %p99 = scmp.eq.s32.totalorder %s26, 0
      %p100 = por %p98, %p99
      %s101 = ssub.s32 %s20, %s27
      %p102 = scmp.eq.s32.totalorder %s101, 0
      %s104 = sadd.s32 %s103, 1
      %s105 = scalar_select %p102, %s103, %s104
      %p108 = pneg %p102
      %p109 = scmp.eq.s32.totalorder %s20, 1
      %p110 = por %p108, %p109
      %p111 = scmp.ne.s32.totalorder %s103, %s106
      %p112 = scmp.eq.s32.totalorder %s20, 0
      %p113 = por %p111, %p112
      %p114 = scmp.ne.s32.totalorder %s103, %s106
      %p115 = scmp.eq.s32.totalorder %s25, 1
      %p116 = por %p114, %p115
      %p117 = scmp.ne.s32.totalorder %s106, %s107
      %p118 = scmp.eq.s32.totalorder %s25, 0
      %p119 = por %p117, %p118
      %p120 = scmp.ne.s32.totalorder %s106, %s107
      %p121 = scmp.eq.s32.totalorder %s26, 1
      %p122 = por %p120, %p121
      %p124 = scmp.ne.s32.totalorder %s107, %s123
      %p125 = scmp.eq.s32.totalorder %s26, 0
      %p126 = por %p124, %p125
      %s127 = ssub.s32 %s20, %s27
      %p128 = scmp.eq.s32.totalorder %s127, 0
      %s130 = sadd.s32 %s129, 1
      %s131 = scalar_select %p128, %s129, %s130
      %p134 = pneg %p128
      %p135 = scmp.eq.s32.totalorder %s20, 1
      %p136 = por %p134, %p135
      %p137 = scmp.ne.s32.totalorder %s129, %s132
      %p138 = scmp.eq.s32.totalorder %s20, 0
      %p139 = por %p137, %p138
      %p140 = scmp.ne.s32.totalorder %s129, %s132
      %p141 = scmp.eq.s32.totalorder %s25, 1
      %p142 = por %p140, %p141
      %p143 = scmp.ne.s32.totalorder %s132, %s133
      %p144 = scmp.eq.s32.totalorder %s25, 0
      %p145 = por %p143, %p144
      %p146 = scmp.ne.s32.totalorder %s132, %s133
      %p147 = scmp.eq.s32.totalorder %s26, 1
      %p148 = por %p146, %p147
      %p150 = scmp.ne.s32.totalorder %s133, %s149
      %p151 = scmp.eq.s32.totalorder %s26, 0
      %p152 = por %p150, %p151
      %p153 = scmp.le.s32.totalorder 1, %s20
      %p154 = scmp.lt.s32.totalorder %s20, 3
      %p155 = pnand %p153, %p154
      %p156 = pneg %p155
      // Predicated region
      $region9: #{tpu_custom_call.1} parent=5 // pred_check
        _
      $region10: #{tpu_custom_call.1} parent=5 // pred_check_branch
        %158 = sbr.rel (%p155) target = $region12
      $region11: #{tpu_custom_call.1} parent=5 // pred_region
        %s159 = ssub.s32 %s20, 1
        // Predicated region
        $region13: #{tpu_custom_call.1} parent=11 // pred_check
          %p160 = pneg %p41
        $region14: #{tpu_custom_call.1} parent=11 // pred_check_branch
          %162 = sbr.rel (%p160) target = $region16
        $region15: #{tpu_custom_call.1} parent=11 // pred_region
          %164 = vsyncadd [#allocation3], 0
          %s166 = sshll.u32 %s0, 4
          %s167 = int_to_ptr.hbm [resolvable:$true] %s166
          %s168 = sshll.u32 [#allocation2], 4
          %s169 = int_to_ptr.vmem [resolvable:$true] %s168
          %171 = dma.hbm_to_vmem [thread:$0]  %s167, 256, %s169, [#allocation3]
        $region16: #{tpu_custom_call.1} parent=11 // pred_fallthru
          _
      $region12: #{tpu_custom_call.1} parent=5 // pred_fallthru
        _
      %p172 = scmp.lt.s32.totalorder %s20, 2
      // Predicated region
      $region17: #{tpu_custom_call.1} parent=5 // pred_check
        %p173 = pneg %p172
      $region18: #{tpu_custom_call.1} parent=5 // pred_check_branch
        %175 = sbr.rel (%p173) target = $region20
      $region19: #{tpu_custom_call.1} parent=5 // pred_region
        // Predicated region
        $region21: #{tpu_custom_call.1} parent=19 // pred_check
          %p176 = pneg %p61
        $region22: #{tpu_custom_call.1} parent=19 // pred_check_branch
          %178 = sbr.rel (%p176) target = $region24
        $region23: #{tpu_custom_call.1} parent=19 // pred_region
          %s179 = sand.u32 %s20, 1
          %s180 = scalar_lea.sflag [#allocation6], %s179
          %s181 = sand.u32 %s51, 1
          %s182 = smul.addr %s181, 256
          %s183 = scalar_lea.vmem [#allocation5], %s182
          %185 = vsyncadd %s180, 0
          %s186 = smul.addr %s20, 8
          %s187 = scalar_lea.hbm %s1, %s186
          %s188 = sshll.u32 %s187, 4
          %s189 = int_to_ptr.hbm [resolvable:$true] %s188
          %s190 = sshll.u32 %s183, 4
          %s191 = int_to_ptr.vmem [resolvable:$true] %s190
          %196 = dma.hbm_to_vmem [thread:$0]  %s189, 4096, %s191, %s180, 256, 128, 8
        $region24: #{tpu_custom_call.1} parent=19 // pred_fallthru
          _
        // Predicated region
        $region25: #{tpu_custom_call.1} parent=19 // pred_check
          %p197 = pneg %p87
        $region26: #{tpu_custom_call.1} parent=19 // pred_check_branch
          %199 = sbr.rel (%p197) target = $region28
        $region27: #{tpu_custom_call.1} parent=19 // pred_region
          %s200 = sand.u32 %s20, 1
          %s201 = scalar_lea.sflag [#allocation6], %s200
          %s202 = sand.u32 %s77, 1
          %s203 = smul.addr %s202, 4
          %s204 = scalar_lea.vmem [#allocation7], %s203
          %206 = vsyncadd %s201, 0
          %s207 = smul.addr %s20, 4
          %s208 = scalar_lea.hbm %s2, %s207
          %s210 = sshll.u32 %s208, 4
          %s211 = int_to_ptr.hbm [resolvable:$true] %s210
          %s212 = sshll.u32 %s204, 4
          %s213 = int_to_ptr.vmem [resolvable:$true] %s212
          %215 = dma.hbm_to_vmem [thread:$0]  %s211, 64, %s213, %s201
        $region28: #{tpu_custom_call.1} parent=19 // pred_fallthru
          _
        // Predicated region
        $region29: #{tpu_custom_call.1} parent=19 // pred_check
          %p216 = pneg %p113
        $region30: #{tpu_custom_call.1} parent=19 // pred_check_branch
          %218 = sbr.rel (%p216) target = $region32
        $region31: #{tpu_custom_call.1} parent=19 // pred_region
          %s219 = sand.u32 %s103, 1
          %s220 = scalar_lea.sflag [#allocation9], %s219
          %s221 = sand.u32 %s103, 1
          %s222 = smul.addr %s221, 8
          %s223 = scalar_lea.vmem [#allocation8], %s222
          %225 = vsyncadd %s220, 0
          %s226 = smul.addr %s20, 8
          %s227 = scalar_lea.hbm %s3, %s226
          %s229 = sshll.u32 %s227, 4
          %s230 = int_to_ptr.hbm [resolvable:$true] %s229
          %s231 = sshll.u32 %s223, 4
          %s232 = int_to_ptr.vmem [resolvable:$true] %s231
          %234 = dma.hbm_to_vmem [thread:$0]  %s230, 128, %s232, %s220
        $region32: #{tpu_custom_call.1} parent=19 // pred_fallthru
          _
      $region20: #{tpu_custom_call.1} parent=5 // pred_fallthru
        _
      %p235 = scmp.le.s32.totalorder 1, %s20
      %p236 = scmp.lt.s32.totalorder %s20, 3
      %p237 = pnand %p235, %p236
      %p238 = pneg %p237
      // Predicated region
      $region33: #{tpu_custom_call.1} parent=5 // pred_check
        _
      $region34: #{tpu_custom_call.1} parent=5 // pred_check_branch
        %240 = sbr.rel (%p237) target = $region36
      $region35: #{tpu_custom_call.1} parent=5 // pred_region
        %s241 = ssub.s32 %s20, 1
        // Predicated region
        $region37: #{tpu_custom_call.1} parent=35 // pred_check
          %p242 = pneg %p41
        $region38: #{tpu_custom_call.1} parent=35 // pred_check_branch
          %244 = sbr.rel (%p242) target = $region40
        $region39: #{tpu_custom_call.1} parent=35 // pred_region
          %246 = dma.done [#allocation3], 256
        $region40: #{tpu_custom_call.1} parent=35 // pred_fallthru
          _
        %s247 = sand.u32 %s25, 1
        %s248 = scalar_lea.sflag [#allocation6], %s247
        %s249 = sand.u32 %s54, 1
        %s250 = smul.addr %s249, 256
        %s251 = scalar_lea.vmem [#allocation5], %s250
        // Predicated region
        $region41: #{tpu_custom_call.1} parent=35 // pred_check
          %p252 = pneg %p67
        $region42: #{tpu_custom_call.1} parent=35 // pred_check_branch
          %254 = sbr.rel (%p252) target = $region44
        $region43: #{tpu_custom_call.1} parent=35 // pred_region
          %256 = dma.done %s248, 4096
        $region44: #{tpu_custom_call.1} parent=35 // pred_fallthru
          _
        %s257 = sand.u32 %s25, 1
        %s258 = scalar_lea.sflag [#allocation6], %s257
        %s259 = sand.u32 %s80, 1
        %s260 = smul.addr %s259, 4
        %s261 = scalar_lea.vmem [#allocation7], %s260
        // Predicated region
        $region45: #{tpu_custom_call.1} parent=35 // pred_check
          %p262 = pneg %p93
        $region46: #{tpu_custom_call.1} parent=35 // pred_check_branch
          %264 = sbr.rel (%p262) target = $region48
        $region47: #{tpu_custom_call.1} parent=35 // pred_region
          %266 = dma.done %s258, 64
        $region48: #{tpu_custom_call.1} parent=35 // pred_fallthru
          _
        %s267 = sand.u32 %s106, 1
        %s268 = scalar_lea.sflag [#allocation9], %s267
        %s269 = sand.u32 %s106, 1
        %s270 = smul.addr %s269, 8
        %s271 = scalar_lea.vmem [#allocation8], %s270
        // Predicated region
        $region49: #{tpu_custom_call.1} parent=35 // pred_check
          %p272 = pneg %p119
        $region50: #{tpu_custom_call.1} parent=35 // pred_check_branch
          %274 = sbr.rel (%p272) target = $region52
        $region51: #{tpu_custom_call.1} parent=35 // pred_region
          %276 = dma.done %s268, 128
        $region52: #{tpu_custom_call.1} parent=35 // pred_fallthru
          _
        %p277 = pneg %p41
        %p278 = pneg %p38
        %s279 = sand.u32 %s25, 1
        %s280 = scalar_lea.sflag [#allocation6], %s279
        %s281 = sand.u32 %s54, 1
        %s282 = smul.addr %s281, 256
        %s283 = scalar_lea.vmem [#allocation5], %s282
        %p284 = pneg %p67
        %p285 = pneg %p64
        %s286 = sand.u32 %s25, 1
        %s287 = scalar_lea.sflag [#allocation6], %s286
        %s288 = sand.u32 %s80, 1
        %s289 = smul.addr %s288, 4
        %s290 = scalar_lea.vmem [#allocation7], %s289
        %p291 = pneg %p93
        %p292 = pneg %p90
        %s293 = sand.u32 %s106, 1
        %s294 = scalar_lea.sflag [#allocation9], %s293
        %s295 = sand.u32 %s106, 1
        %s296 = smul.addr %s295, 8
        %s297 = scalar_lea.vmem [#allocation8], %s296
        %p298 = pneg %p119
        %p299 = pneg %p116
        %p300 = pneg %p145
        %p301 = pneg %p142
        %s302 = sand.u32 %s132, 1
        %s303 = scalar_lea.sflag [#allocation4], %s302
        %s304 = sand.u32 %s132, 1
        %s305 = smul.addr %s304, 8
        %s306 = scalar_lea.vmem [#allocation10], %s305
        %s307 = smul.u32 %s25, 128
        %s308 = sshra.s32 %s307, 7
        %s309 = sand.u32 %s307, 127
        %s310 = smul.addr %s308, 8
        %s311 = scalar_lea.vmem [#allocation2], %s310
        %v312 = vld [vmem:[%s311] sm:$0xff]
        %v313 = vld [vmem:[#allocation2] sm:$0xff]
        %v314 = vld [vmem:[#allocation2 + $0x8] sm:$0xff]
        %v315 = vld [vmem:[%s251] sm:$0xff]
        %v316 = vld [vmem:[%s251 + $0x8] sm:$0xff]
        %v317 = vld [vmem:[%s251 + $0x10] sm:$0xff]
        %v318 = vld [vmem:[%s251 + $0x18] sm:$0xff]
        %v319 = vld [vmem:[%s251 + $0x20] sm:$0xff]
        %v320 = vld [vmem:[%s251 + $0x28] sm:$0xff]
        %v321 = vld [vmem:[%s251 + $0x30] sm:$0xff]
        %v322 = vld [vmem:[%s251 + $0x38] sm:$0xff]
        %v323 = vld [vmem:[%s251 + $0x40] sm:$0xff]
        %v324 = vld [vmem:[%s251 + $0x48] sm:$0xff]
        %v325 = vld [vmem:[%s251 + $0x50] sm:$0xff]
        %v326 = vld [vmem:[%s251 + $0x58] sm:$0xff]
        %v327 = vld [vmem:[%s251 + $0x60] sm:$0xff]
        %v328 = vld [vmem:[%s251 + $0x68] sm:$0xff]
        %v329 = vld [vmem:[%s251 + $0x70] sm:$0xff]
        %v330 = vld [vmem:[%s251 + $0x78] sm:$0xff]
        %v331 = vld [vmem:[%s251 + $0x80] sm:$0xff]
        %v332 = vld [vmem:[%s251 + $0x88] sm:$0xff]
        %v333 = vld [vmem:[%s251 + $0x90] sm:$0xff]
        %v334 = vld [vmem:[%s251 + $0x98] sm:$0xff]
        %v335 = vld [vmem:[%s251 + $0xa0] sm:$0xff]
        %v336 = vld [vmem:[%s251 + $0xa8] sm:$0xff]
        %v337 = vld [vmem:[%s251 + $0xb0] sm:$0xff]
        %v338 = vld [vmem:[%s251 + $0xb8] sm:$0xff]
        %v339 = vld [vmem:[%s251 + $0xc0] sm:$0xff]
        %v340 = vld [vmem:[%s251 + $0xc8] sm:$0xff]
        %v341 = vld [vmem:[%s251 + $0xd0] sm:$0xff]
        %v342 = vld [vmem:[%s251 + $0xd8] sm:$0xff]
        %v343 = vld [vmem:[%s251 + $0xe0] sm:$0xff]
        %v344 = vld [vmem:[%s251 + $0xe8] sm:$0xff]
        %v345 = vld [vmem:[%s251 + $0xf0] sm:$0xff]
        %v346 = vld [vmem:[%s251 + $0xf8] sm:$0xff]
        %v347 = vld [vmem:[%s261] sm:$0x7]
        %v348 = vperm.slane %v347, 0
        %349 = vmatpush.msra.mxu0 %v330
        %350 = vmatpush.msra.mxu0 %v329
        %351 = vmatpush.msra.mxu0 %v328
        %352 = vmatpush.msra.mxu0 %v327
        %353 = vmatpush.msra.mxu0 %v326
        %354 = vmatpush.msra.mxu0 %v325
        %355 = vmatpush.msra.mxu0 %v324
        %356 = vmatpush.msra.mxu0 %v323
        %357 = vmatpush.msra.mxu0 %v322
        %358 = vmatpush.msra.mxu0 %v321
        %359 = vmatpush.msra.mxu0 %v320
        %360 = vmatpush.msra.mxu0 %v319
        %361 = vmatpush.msra.mxu0 %v318
        %362 = vmatpush.msra.mxu0 %v317
        %363 = vmatpush.msra.mxu0 %v316
        %364 = vmatpush.msra.mxu0 %v315
        %365 = vmatmul.f32.gmra.mxu0 %v313
        %v366 = vpop.f32.mrf.mxu0
        %v367 = vadd.f32 %v348, %v366
        %368 = vdwg.mxu0
        %369 = vmatpush.msra.mxu0 %v346
        %370 = vmatpush.msra.mxu0 %v345
        %371 = vmatpush.msra.mxu0 %v344
        %372 = vmatpush.msra.mxu0 %v343
        %373 = vmatpush.msra.mxu0 %v342
        %374 = vmatpush.msra.mxu0 %v341
        %375 = vmatpush.msra.mxu0 %v340
        %376 = vmatpush.msra.mxu0 %v339
        %377 = vmatpush.msra.mxu0 %v338
        %378 = vmatpush.msra.mxu0 %v337
        %379 = vmatpush.msra.mxu0 %v336
        %380 = vmatpush.msra.mxu0 %v335
        %381 = vmatpush.msra.mxu0 %v334
        %382 = vmatpush.msra.mxu0 %v333
        %383 = vmatpush.msra.mxu0 %v332
        %384 = vmatpush.msra.mxu0 %v331
        %385 = vmatmul.f32.gmra.mxu0 %v314
        %v386 = vpop.f32.mrf.mxu0
        %v387 = vadd.f32 %v367, %v386
        %388 = vdwg.mxu0
        %vm389 = vcmp.ge.f32.partialorder %v387, 0.0
        %v390 = vmul.f32 %v387, 0.01
        %v391 = vsel %vm389, %v387, %v390
        %v392 = vadd.f32 %v312, %v391
        %v393 = vld [vmem:[%s271] sm:$0xff]
        %v394 = vmul.f32 %v392, %v393
        %v395 = vrot.slane %v394, 4
        %v396 = vadd.f32 %v394, %v395
        %v397 = vrot.slane %v396, 2
        %v398 = vadd.f32 %v396, %v397
        %v399 = vrot.slane %v398, 1
        %v400 = vadd.f32 %v398, %v399
        %v401 = vmul.f32 %v400, 0.125
        %v402 = vsub.f32 %v394, %v401
        %v403 = vmul.f32 %v402, %v402
        %v404 = vrot.slane %v403, 4
        %v405 = vadd.f32 %v403, %v404
        %v406 = vrot.slane %v405, 2
        %v407 = vadd.f32 %v405, %v406
        %v408 = vrot.slane %v407, 1
        %v409 = vadd.f32 %v407, %v408
        %v410 = vmul.f32 %v409, 0.125
        %v411 = vadd.f32 %v410, 1e-05
        %v412 = vrsqrt.pop %v411
        %v413 = vmul.f32 %v412, %v411
        %v414 = vmul.f32 %v413, %v412
        %v415 = vmul.f32 0.5, %v414
        %v416 = vsub.f32 1.5, %v415
        %v417 = vmul.f32 %v412, %v416
        %vm418 = vweird.f32 %v411
        %vm419 = vweird.f32 %v412
        %vm420 = vmor %vm418, %vm419
        %v421 = vsel %vm420, %v412, %v417
        %v422 = vmul.f32 %v347, %v421
        %v423 = vperm.slane %v422, 1
        %v424 = vmul.f32 %v402, %v423
        %v425 = vperm.slane %v347, 2
        %v426 = vadd.f32 %v424, %v425
        %427 = vst [vmem:[%s306] sm:$0xff] %v426
        %s428 = sand.u32 %s132, 1
        %s429 = scalar_lea.sflag [#allocation4], %s428
        %s430 = sand.u32 %s132, 1
        %s431 = smul.addr %s430, 8
        %s432 = scalar_lea.vmem [#allocation10], %s431
        // Predicated region
        $region53: #{tpu_custom_call.1} parent=35 // pred_check
          %p433 = pneg %p142
        $region54: #{tpu_custom_call.1} parent=35 // pred_check_branch
          %435 = sbr.rel (%p433) target = $region56
        $region55: #{tpu_custom_call.1} parent=35 // pred_region
          %437 = vsyncadd %s429, 0
          %s438 = smul.addr %s25, 8
          %s439 = scalar_lea.hbm %s4, %s438
          %s441 = sshll.u32 %s432, 4
          %s442 = int_to_ptr.vmem [resolvable:$true] %s441
          %s443 = sshll.u32 %s439, 4
          %s444 = int_to_ptr.hbm [resolvable:$true] %s443
          %446 = dma.vmem_to_hbm [thread:$0]  %s442, 128, %s444, %s429
        $region56: #{tpu_custom_call.1} parent=35 // pred_fallthru
          _
      $region36: #{tpu_custom_call.1} parent=5 // pred_fallthru
        _
      %p447 = scmp.le.s32.totalorder 2, %s20
      // Predicated region
      $region57: #{tpu_custom_call.1} parent=5 // pred_check
        %p448 = pneg %p447
      $region58: #{tpu_custom_call.1} parent=5 // pred_check_branch
        %450 = sbr.rel (%p448) target = $region60
      $region59: #{tpu_custom_call.1} parent=5 // pred_region
        %s451 = ssub.s32 %s20, 2
        // Predicated region
        $region61: #{tpu_custom_call.1} parent=59 // pred_check
          %p452 = pneg %p148
        $region62: #{tpu_custom_call.1} parent=59 // pred_check_branch
          %454 = sbr.rel (%p452) target = $region64
        $region63: #{tpu_custom_call.1} parent=59 // pred_region
          %s455 = sand.u32 %s133, 1
          %s456 = scalar_lea.sflag [#allocation4], %s455
          %s457 = sand.u32 %s133, 1
          %s458 = smul.addr %s457, 8
          %s459 = scalar_lea.vmem [#allocation10], %s458
          %461 = dma.done %s456, 128
        $region64: #{tpu_custom_call.1} parent=59 // pred_fallthru
          _
      $region60: #{tpu_custom_call.1} parent=5 // pred_fallthru
        _
    $region6: #{tpu_custom_call.1} parent=1 // loop_footer
      %s24 = sadd.s32 1, %s20
    $region7: #{tpu_custom_call.1} parent=1 // loop_footer_branch
      %19 = sbr.rel target = $region3
    $region8: #{tpu_custom_call.1} parent=1 // loop_exit
      _
    %462 = vsyncpa [#allocation3], 1
    %s463 = scalar_lea.sflag [#allocation3], 1
    %464 = vsyncpa %s463, 1
    %465 = vsyncpa [#allocation6], 1
    %s466 = scalar_lea.sflag [#allocation6], 1
    %467 = vsyncpa %s466, 1
    %468 = vsyncpa [#allocation9], 1
    %s469 = scalar_lea.sflag [#allocation9], 1
    %470 = vsyncpa %s469, 1
    %471 = vsyncpa [#allocation4], 1
    %s472 = scalar_lea.sflag [#allocation4], 1
    %473 = vsyncpa %s472, 1

// kernel: tpu_custom_call.1
$region0: #{tpu_custom_call.1}
  #allocation0 [shape = 'u32[]', space=smem, size = 0x4, offset = 0x4, fixed_abs, tag = 'smem constant byte address 0x4 - core index']
  #allocation1 [shape = 'u32[72,128]{1,0:T(1,128)}', space=vmem, size = 0x9000, scoped, tag = 'internal scratch']
  %s0 = inlined_call_operand.hbm [shape: f32[8,256], index: 0, kind: input, shape index: {}]
  %s1 = inlined_call_operand.hbm [shape: f32[256,256], index: 1, kind: input, shape index: {}]
  %s2 = inlined_call_operand.hbm [shape: f32[3,256], index: 2, kind: input, shape index: {}]
  %s3 = inlined_call_operand.hbm [shape: f32[8,256], index: 3, kind: input, shape index: {}]
  %s4 = inlined_call_operand.hbm [shape: f32[8,256], index: 4, kind: output, shape index: {}]
  %s5 = sld [smem:[#allocation0]]
  $region65: #{tpu_custom_call.1} parent=0
    _
  %s7 = ssub.s32 1, %s5
  %s8 = scalar_select 0, %s7, %s5
  $region1: #{tpu_custom_call.1} parent=0
    #allocation2 [shape = 'u8[8192]{0}', space=vmem, size = 0x2000, scoped, tag = 'input window, operand 0, single buffered']
    #allocation3 [shape = 's32[2]{0}', space=sflag, size = 0x8, scoped, tag = 'scoped memory for tpu_custom_call.1']
    #allocation4 [shape = 's32[2]{0}', space=sflag, size = 0x8, scoped, tag = 'scoped memory for tpu_custom_call.1']
    #allocation5 [shape = 'u8[262144]{0}', space=vmem, size = 0x40000, scoped, tag = 'input window, operand 1']
    #allocation6 [shape = 's32[2]{0}', space=sflag, size = 0x8, scoped, tag = 'scoped memory for tpu_custom_call.1']
    #allocation7 [shape = 'u8[4096]{0}', space=vmem, size = 0x1000, scoped, tag = 'input window, operand 2']
    #allocation8 [shape = 'u8[8192]{0}', space=vmem, size = 0x2000, scoped, tag = 'input window, operand 3']
    #allocation9 [shape = 's32[2]{0}', space=sflag, size = 0x8, scoped, tag = 'scoped memory for tpu_custom_call.1']
    #allocation10 [shape = 'u8[8192]{0}', space=vmem, size = 0x2000, scoped, tag = 'output window, operand 0']
    %9 = vsyncpa [#allocation3], 0
    %10 = vsyncpa [#allocation6], 0
    %s11 = scalar_lea.sflag [#allocation6], 1
    %12 = vsyncpa %s11, 0
    %13 = vsyncpa [#allocation9], 0
    %s14 = scalar_lea.sflag [#allocation9], 1
    %15 = vsyncpa %s14, 0
    %16 = vsyncpa [#allocation4], 0
    %s17 = scalar_lea.sflag [#allocation4], 1
    %18 = vsyncpa %s17, 0
    loop: start=0, step=1, limit=4
    $region2: #{tpu_custom_call.1} parent=1 // loop_pre_header
      _
    $region3: #{tpu_custom_call.1} parent=1 // loop_header
      %s20 = sphi 0, %s24
      %p21 = scmp.ge.s32.totalorder %s20, 4
      %s28 = sphi 0, %s28
      %s30 = sphi 0, %s28
      %s31 = sphi 0, %s30
      %s45 = sphi 0, %s31
      %s51 = sphi 0, %s53
      %s54 = sphi 0, %s51
      %s55 = sphi 0, %s54
      %s71 = sphi 0, %s55
      %s77 = sphi 0, %s79
      %s80 = sphi 0, %s77
      %s81 = sphi 0, %s80
      %s97 = sphi 0, %s81
      %s103 = sphi 0, %s105
      %s106 = sphi 0, %s103
      %s107 = sphi 0, %s106
      %s123 = sphi 0, %s107
      %s129 = sphi 0, %s131
      %s132 = sphi 0, %s129
      %s133 = sphi 0, %s132
      %s149 = sphi 0, %s133
    $region4: #{tpu_custom_call.1} parent=1 // loop_header_branch
      %23 = sbr.rel (%p21) target = $region8
    $region5: #{tpu_custom_call.1} parent=1 // loop_body
      %s25 = ssub.s32 %s20, 1
      %s26 = ssub.s32 %s20, 2
      %s27 = sadd.s32 %s20, 1
      %s29 = sadd.s32 %s28, 1
      %p32 = scmp.eq.s32.totalorder %s20, 1
      %p33 = scmp.ne.s32.totalorder %s28, %s30
      %p34 = scmp.eq.s32.totalorder %s20, 0
      %p35 = por %p33, %p34
      %p36 = scmp.ne.s32.totalorder %s28, %s30
      %p37 = scmp.eq.s32.totalorder %s25, 1
      %p38 = por %p36, %p37
      %p39 = scmp.ne.s32.totalorder %s30, %s31
      %p40 = scmp.eq.s32.totalorder %s25, 0
      %p41 = por %p39, %p40
      %p42 = scmp.ne.s32.totalorder %s30, %s31
      %p43 = scmp.eq.s32.totalorder %s26, 1
      %p44 = por %p42, %p43
      %p46 = scmp.ne.s32.totalorder %s31, %s45
      %p47 = scmp.eq.s32.totalorder %s26, 0
      %p48 = por %p46, %p47
      %s49 = ssub.s32 %s20, %s27
      %p50 = scmp.eq.s32.totalorder %s49, 0
      %s52 = sadd.s32 %s51, 1
      %s53 = scalar_select %p50, %s51, %s52
      %p56 = pneg %p50
      %p57 = scmp.eq.s32.totalorder %s20, 1
      %p58 = por %p56, %p57
      %p59 = scmp.ne.s32.totalorder %s51, %s54
      %p60 = scmp.eq.s32.totalorder %s20, 0
      %p61 = por %p59, %p60
      %p62 = scmp.ne.s32.totalorder %s51, %s54
      %p63 = scmp.eq.s32.totalorder %s25, 1
      %p64 = por %p62, %p63
      %p65 = scmp.ne.s32.totalorder %s54, %s55
      %p66 = scmp.eq.s32.totalorder %s25, 0
      %p67 = por %p65, %p66
      %p68 = scmp.ne.s32.totalorder %s54, %s55
      %p69 = scmp.eq.s32.totalorder %s26, 1
      %p70 = por %p68, %p69
      %p72 = scmp.ne.s32.totalorder %s55, %s71
      %p73 = scmp.eq.s32.totalorder %s26, 0
      %p74 = por %p72, %p73
      %s75 = ssub.s32 %s20, %s27
      %p76 = scmp.eq.s32.totalorder %s75, 0
      %s78 = sadd.s32 %s77, 1
      %s79 = scalar_select %p76, %s77, %s78
      %p82 = pneg %p76
      %p83 = scmp.eq.s32.totalorder %s20, 1
      %p84 = por %p82, %p83
      %p85 = scmp.ne.s32.totalorder %s77, %s80
      %p86 = scmp.eq.s32.totalorder %s20, 0
      %p87 = por %p85, %p86
      %p88 = scmp.ne.s32.totalorder %s77, %s80
      %p89 = scmp.eq.s32.totalorder %s25, 1
      %p90 = por %p88, %p89
      %p91 = scmp.ne.s32.totalorder %s80, %s81
      %p92 = scmp.eq.s32.totalorder %s25, 0
      %p93 = por %p91, %p92
      %p94 = scmp.ne.s32.totalorder %s80, %s81
      %p95 = scmp.eq.s32.totalorder %s26, 1
      %p96 = por %p94, %p95
      %p98 = scmp.ne.s32.totalorder %s81, %s97
      %p99 = scmp.eq.s32.totalorder %s26, 0
      %p100 = por %p98, %p99
      %s101 = ssub.s32 %s20, %s27
      %p102 = scmp.eq.s32.totalorder %s101, 0
      %s104 = sadd.s32 %s103, 1
      %s105 = scalar_select %p102, %s103, %s104
      %p108 = pneg %p102
      %p109 = scmp.eq.s32.totalorder %s20, 1
      %p110 = por %p108, %p109
      %p111 = scmp.ne.s32.totalorder %s103, %s106
      %p112 = scmp.eq.s32.totalorder %s20, 0
      %p113 = por %p111, %p112
      %p114 = scmp.ne.s32.totalorder %s103, %s106
      %p115 = scmp.eq.s32.totalorder %s25, 1
      %p116 = por %p114, %p115
      %p117 = scmp.ne.s32.totalorder %s106, %s107
      %p118 = scmp.eq.s32.totalorder %s25, 0
      %p119 = por %p117, %p118
      %p120 = scmp.ne.s32.totalorder %s106, %s107
      %p121 = scmp.eq.s32.totalorder %s26, 1
      %p122 = por %p120, %p121
      %p124 = scmp.ne.s32.totalorder %s107, %s123
      %p125 = scmp.eq.s32.totalorder %s26, 0
      %p126 = por %p124, %p125
      %s127 = ssub.s32 %s20, %s27
      %p128 = scmp.eq.s32.totalorder %s127, 0
      %s130 = sadd.s32 %s129, 1
      %s131 = scalar_select %p128, %s129, %s130
      %p134 = pneg %p128
      %p135 = scmp.eq.s32.totalorder %s20, 1
      %p136 = por %p134, %p135
      %p137 = scmp.ne.s32.totalorder %s129, %s132
      %p138 = scmp.eq.s32.totalorder %s20, 0
      %p139 = por %p137, %p138
      %p140 = scmp.ne.s32.totalorder %s129, %s132
      %p141 = scmp.eq.s32.totalorder %s25, 1
      %p142 = por %p140, %p141
      %p143 = scmp.ne.s32.totalorder %s132, %s133
      %p144 = scmp.eq.s32.totalorder %s25, 0
      %p145 = por %p143, %p144
      %p146 = scmp.ne.s32.totalorder %s132, %s133
      %p147 = scmp.eq.s32.totalorder %s26, 1
      %p148 = por %p146, %p147
      %p150 = scmp.ne.s32.totalorder %s133, %s149
      %p151 = scmp.eq.s32.totalorder %s26, 0
      %p152 = por %p150, %p151
      %p153 = scmp.le.s32.totalorder 1, %s20
      %p154 = scmp.lt.s32.totalorder %s20, 3
      %p155 = pnand %p153, %p154
      %p156 = pneg %p155
      // Predicated region
      $region9: #{tpu_custom_call.1} parent=5 // pred_check
        _
      $region10: #{tpu_custom_call.1} parent=5 // pred_check_branch
        %158 = sbr.rel (%p155) target = $region12
      $region11: #{tpu_custom_call.1} parent=5 // pred_region
        %s159 = ssub.s32 %s20, 1
        // Predicated region
        $region13: #{tpu_custom_call.1} parent=11 // pred_check
          %p160 = pneg %p41
        $region14: #{tpu_custom_call.1} parent=11 // pred_check_branch
          %162 = sbr.rel (%p160) target = $region16
        $region15: #{tpu_custom_call.1} parent=11 // pred_region
          %164 = vsyncadd [#allocation3], 0
          %s166 = sshll.u32 %s0, 4
          %s167 = int_to_ptr.hbm [resolvable:$true] %s166
          %s168 = sshll.u32 [#allocation2], 4
          %s169 = int_to_ptr.vmem [resolvable:$true] %s168
          %171 = dma.hbm_to_vmem [thread:$0]  %s167, 256, %s169, [#allocation3]
        $region16: #{tpu_custom_call.1} parent=11 // pred_fallthru
          _
      $region12: #{tpu_custom_call.1} parent=5 // pred_fallthru
        _
      %p172 = scmp.lt.s32.totalorder %s20, 2
      // Predicated region
      $region17: #{tpu_custom_call.1} parent=5 // pred_check
        %p173 = pneg %p172
      $region18: #{tpu_custom_call.1} parent=5 // pred_check_branch
        %175 = sbr.rel (%p173) target = $region20
      $region19: #{tpu_custom_call.1} parent=5 // pred_region
        // Predicated region
        $region21: #{tpu_custom_call.1} parent=19 // pred_check
          %p176 = pneg %p61
        $region22: #{tpu_custom_call.1} parent=19 // pred_check_branch
          %178 = sbr.rel (%p176) target = $region24
        $region23: #{tpu_custom_call.1} parent=19 // pred_region
          %s179 = sand.u32 %s20, 1
          %s180 = scalar_lea.sflag [#allocation6], %s179
          %s181 = sand.u32 %s51, 1
          %s182 = smul.addr %s181, 256
          %s183 = scalar_lea.vmem [#allocation5], %s182
          %185 = vsyncadd %s180, 0
          %s186 = smul.addr %s20, 8
          %s187 = scalar_lea.hbm %s1, %s186
          %s188 = sshll.u32 %s187, 4
          %s189 = int_to_ptr.hbm [resolvable:$true] %s188
          %s190 = sshll.u32 %s183, 4
          %s191 = int_to_ptr.vmem [resolvable:$true] %s190
          %196 = dma.hbm_to_vmem [thread:$0]  %s189, 4096, %s191, %s180, 256, 128, 8
        $region24: #{tpu_custom_call.1} parent=19 // pred_fallthru
          _
        // Predicated region
        $region25: #{tpu_custom_call.1} parent=19 // pred_check
          %p197 = pneg %p87
        $region26: #{tpu_custom_call.1} parent=19 // pred_check_branch
          %199 = sbr.rel (%p197) target = $region28
        $region27: #{tpu_custom_call.1} parent=19 // pred_region
          %s200 = sand.u32 %s20, 1
          %s201 = scalar_lea.sflag [#allocation6], %s200
          %s202 = sand.u32 %s77, 1
          %s203 = smul.addr %s202, 4
          %s204 = scalar_lea.vmem [#allocation7], %s203
          %206 = vsyncadd %s201, 0
          %s207 = smul.addr %s20, 4
          %s208 = scalar_lea.hbm %s2, %s207
          %s210 = sshll.u32 %s208, 4
          %s211 = int_to_ptr.hbm [resolvable:$true] %s210
          %s212 = sshll.u32 %s204, 4
          %s213 = int_to_ptr.vmem [resolvable:$true] %s212
          %215 = dma.hbm_to_vmem [thread:$0]  %s211, 64, %s213, %s201
        $region28: #{tpu_custom_call.1} parent=19 // pred_fallthru
          _
        // Predicated region
        $region29: #{tpu_custom_call.1} parent=19 // pred_check
          %p216 = pneg %p113
        $region30: #{tpu_custom_call.1} parent=19 // pred_check_branch
          %218 = sbr.rel (%p216) target = $region32
        $region31: #{tpu_custom_call.1} parent=19 // pred_region
          %s219 = sand.u32 %s103, 1
          %s220 = scalar_lea.sflag [#allocation9], %s219
          %s221 = sand.u32 %s103, 1
          %s222 = smul.addr %s221, 8
          %s223 = scalar_lea.vmem [#allocation8], %s222
          %225 = vsyncadd %s220, 0
          %s226 = smul.addr %s20, 8
          %s227 = scalar_lea.hbm %s3, %s226
          %s229 = sshll.u32 %s227, 4
          %s230 = int_to_ptr.hbm [resolvable:$true] %s229
          %s231 = sshll.u32 %s223, 4
          %s232 = int_to_ptr.vmem [resolvable:$true] %s231
          %234 = dma.hbm_to_vmem [thread:$0]  %s230, 128, %s232, %s220
        $region32: #{tpu_custom_call.1} parent=19 // pred_fallthru
          _
      $region20: #{tpu_custom_call.1} parent=5 // pred_fallthru
        _
      %p235 = scmp.le.s32.totalorder 1, %s20
      %p236 = scmp.lt.s32.totalorder %s20, 3
      %p237 = pnand %p235, %p236
      %p238 = pneg %p237
      // Predicated region
      $region33: #{tpu_custom_call.1} parent=5 // pred_check
        _
      $region34: #{tpu_custom_call.1} parent=5 // pred_check_branch
        %240 = sbr.rel (%p237) target = $region36
      $region35: #{tpu_custom_call.1} parent=5 // pred_region
        %s241 = ssub.s32 %s20, 1
        // Predicated region
        $region37: #{tpu_custom_call.1} parent=35 // pred_check
          %p242 = pneg %p41
        $region38: #{tpu_custom_call.1} parent=35 // pred_check_branch
          %244 = sbr.rel (%p242) target = $region40
        $region39: #{tpu_custom_call.1} parent=35 // pred_region
          %246 = dma.done [#allocation3], 256
        $region40: #{tpu_custom_call.1} parent=35 // pred_fallthru
          _
        %s247 = sand.u32 %s25, 1
        %s248 = scalar_lea.sflag [#allocation6], %s247
        %s249 = sand.u32 %s54, 1
        %s250 = smul.addr %s249, 256
        %s251 = scalar_lea.vmem [#allocation5], %s250
        // Predicated region
        $region41: #{tpu_custom_call.1} parent=35 // pred_check
          %p252 = pneg %p67
        $region42: #{tpu_custom_call.1} parent=35 // pred_check_branch
          %254 = sbr.rel (%p252) target = $region44
        $region43: #{tpu_custom_call.1} parent=35 // pred_region
          %256 = dma.done %s248, 4096
        $region44: #{tpu_custom_call.1} parent=35 // pred_fallthru
          _
        %s257 = sand.u32 %s25, 1
        %s258 = scalar_lea.sflag [#allocation6], %s257
        %s259 = sand.u32 %s80, 1
        %s260 = smul.addr %s259, 4
        %s261 = scalar_lea.vmem [#allocation7], %s260
        // Predicated region
        $region45: #{tpu_custom_call.1} parent=35 // pred_check
          %p262 = pneg %p93
        $region46: #{tpu_custom_call.1} parent=35 // pred_check_branch
          %264 = sbr.rel (%p262) target = $region48
        $region47: #{tpu_custom_call.1} parent=35 // pred_region
          %266 = dma.done %s258, 64
        $region48: #{tpu_custom_call.1} parent=35 // pred_fallthru
          _
        %s267 = sand.u32 %s106, 1
        %s268 = scalar_lea.sflag [#allocation9], %s267
        %s269 = sand.u32 %s106, 1
        %s270 = smul.addr %s269, 8
        %s271 = scalar_lea.vmem [#allocation8], %s270
        // Predicated region
        $region49: #{tpu_custom_call.1} parent=35 // pred_check
          %p272 = pneg %p119
        $region50: #{tpu_custom_call.1} parent=35 // pred_check_branch
          %274 = sbr.rel (%p272) target = $region52
        $region51: #{tpu_custom_call.1} parent=35 // pred_region
          %276 = dma.done %s268, 128
        $region52: #{tpu_custom_call.1} parent=35 // pred_fallthru
          _
        %p277 = pneg %p41
        %p278 = pneg %p38
        %s279 = sand.u32 %s25, 1
        %s280 = scalar_lea.sflag [#allocation6], %s279
        %s281 = sand.u32 %s54, 1
        %s282 = smul.addr %s281, 256
        %s283 = scalar_lea.vmem [#allocation5], %s282
        %p284 = pneg %p67
        %p285 = pneg %p64
        %s286 = sand.u32 %s25, 1
        %s287 = scalar_lea.sflag [#allocation6], %s286
        %s288 = sand.u32 %s80, 1
        %s289 = smul.addr %s288, 4
        %s290 = scalar_lea.vmem [#allocation7], %s289
        %p291 = pneg %p93
        %p292 = pneg %p90
        %s293 = sand.u32 %s106, 1
        %s294 = scalar_lea.sflag [#allocation9], %s293
        %s295 = sand.u32 %s106, 1
        %s296 = smul.addr %s295, 8
        %s297 = scalar_lea.vmem [#allocation8], %s296
        %p298 = pneg %p119
        %p299 = pneg %p116
        %p300 = pneg %p145
        %p301 = pneg %p142
        %s302 = sand.u32 %s132, 1
        %s303 = scalar_lea.sflag [#allocation4], %s302
        %s304 = sand.u32 %s132, 1
        %s305 = smul.addr %s304, 8
        %s306 = scalar_lea.vmem [#allocation10], %s305
        %s307 = smul.u32 %s25, 128
        %s308 = sshra.s32 %s307, 7
        %s309 = sand.u32 %s307, 127
        %s310 = smul.addr %s308, 8
        %s311 = scalar_lea.vmem [#allocation2], %s310
        %v312 = vld [vmem:[%s311] sm:$0xff]
        %v313 = vld [vmem:[#allocation2] sm:$0xff]
        %v314 = vld [vmem:[#allocation2 + $0x8] sm:$0xff]
        %v315 = vld [vmem:[%s251] sm:$0xff]
        %v316 = vld [vmem:[%s251 + $0x8] sm:$0xff]
        %v317 = vld [vmem:[%s251 + $0x10] sm:$0xff]
        %v318 = vld [vmem:[%s251 + $0x18] sm:$0xff]
        %v319 = vld [vmem:[%s251 + $0x20] sm:$0xff]
        %v320 = vld [vmem:[%s251 + $0x28] sm:$0xff]
        %v321 = vld [vmem:[%s251 + $0x30] sm:$0xff]
        %v322 = vld [vmem:[%s251 + $0x38] sm:$0xff]
        %v323 = vld [vmem:[%s251 + $0x40] sm:$0xff]
        %v324 = vld [vmem:[%s251 + $0x48] sm:$0xff]
        %v325 = vld [vmem:[%s251 + $0x50] sm:$0xff]
        %v326 = vld [vmem:[%s251 + $0x58] sm:$0xff]
        %v327 = vld [vmem:[%s251 + $0x60] sm:$0xff]
        %v328 = vld [vmem:[%s251 + $0x68] sm:$0xff]
        %v329 = vld [vmem:[%s251 + $0x70] sm:$0xff]
        %v330 = vld [vmem:[%s251 + $0x78] sm:$0xff]
        %v331 = vld [vmem:[%s251 + $0x80] sm:$0xff]
        %v332 = vld [vmem:[%s251 + $0x88] sm:$0xff]
        %v333 = vld [vmem:[%s251 + $0x90] sm:$0xff]
        %v334 = vld [vmem:[%s251 + $0x98] sm:$0xff]
        %v335 = vld [vmem:[%s251 + $0xa0] sm:$0xff]
        %v336 = vld [vmem:[%s251 + $0xa8] sm:$0xff]
        %v337 = vld [vmem:[%s251 + $0xb0] sm:$0xff]
        %v338 = vld [vmem:[%s251 + $0xb8] sm:$0xff]
        %v339 = vld [vmem:[%s251 + $0xc0] sm:$0xff]
        %v340 = vld [vmem:[%s251 + $0xc8] sm:$0xff]
        %v341 = vld [vmem:[%s251 + $0xd0] sm:$0xff]
        %v342 = vld [vmem:[%s251 + $0xd8] sm:$0xff]
        %v343 = vld [vmem:[%s251 + $0xe0] sm:$0xff]
        %v344 = vld [vmem:[%s251 + $0xe8] sm:$0xff]
        %v345 = vld [vmem:[%s251 + $0xf0] sm:$0xff]
        %v346 = vld [vmem:[%s251 + $0xf8] sm:$0xff]
        %v347 = vld [vmem:[%s261] sm:$0x7]
        %v348 = vperm.slane %v347, 0
        %349 = vmatpush.msra.mxu0 %v330
        %350 = vmatpush.msra.mxu0 %v329
        %351 = vmatpush.msra.mxu0 %v328
        %352 = vmatpush.msra.mxu0 %v327
        %353 = vmatpush.msra.mxu0 %v326
        %354 = vmatpush.msra.mxu0 %v325
        %355 = vmatpush.msra.mxu0 %v324
        %356 = vmatpush.msra.mxu0 %v323
        %357 = vmatpush.msra.mxu0 %v322
        %358 = vmatpush.msra.mxu0 %v321
        %359 = vmatpush.msra.mxu0 %v320
        %360 = vmatpush.msra.mxu0 %v319
        %361 = vmatpush.msra.mxu0 %v318
        %362 = vmatpush.msra.mxu0 %v317
        %363 = vmatpush.msra.mxu0 %v316
        %364 = vmatpush.msra.mxu0 %v315
        %365 = vmatmul.f32.gmra.mxu0 %v313
        %v366 = vpop.f32.mrf.mxu0
        %v367 = vadd.f32 %v348, %v366
        %368 = vdwg.mxu0
        %369 = vmatpush.msra.mxu0 %v346
        %370 = vmatpush.msra.mxu0 %v345
        %371 = vmatpush.msra.mxu0 %v344
        %372 = vmatpush.msra.mxu0 %v343
        %373 = vmatpush.msra.mxu0 %v342
        %374 = vmatpush.msra.mxu0 %v341
        %375 = vmatpush.msra.mxu0 %v340
        %376 = vmatpush.msra.mxu0 %v339
        %377 = vmatpush.msra.mxu0 %v338
        %378 = vmatpush.msra.mxu0 %v337
        %379 = vmatpush.msra.mxu0 %v336
        %380 = vmatpush.msra.mxu0 %v335
        %381 = vmatpush.msra.mxu0 %v334
        %382 = vmatpush.msra.mxu0 %v333
        %383 = vmatpush.msra.mxu0 %v332
        %384 = vmatpush.msra.mxu0 %v331
        %385 = vmatmul.f32.gmra.mxu0 %v314
        %v386 = vpop.f32.mrf.mxu0
        %v387 = vadd.f32 %v367, %v386
        %388 = vdwg.mxu0
        %vm389 = vcmp.ge.f32.partialorder %v387, 0.0
        %v390 = vmul.f32 %v387, 0.01
        %v391 = vsel %vm389, %v387, %v390
        %v392 = vadd.f32 %v312, %v391
        %v393 = vld [vmem:[%s271] sm:$0xff]
        %v394 = vmul.f32 %v392, %v393
        %v395 = vrot.slane %v394, 4
        %v396 = vadd.f32 %v394, %v395
        %v397 = vrot.slane %v396, 2
        %v398 = vadd.f32 %v396, %v397
        %v399 = vrot.slane %v398, 1
        %v400 = vadd.f32 %v398, %v399
        %v401 = vmul.f32 %v400, 0.125
        %v402 = vsub.f32 %v394, %v401
        %v403 = vmul.f32 %v402, %v402
        %v404 = vrot.slane %v403, 4
        %v405 = vadd.f32 %v403, %v404
        %v406 = vrot.slane %v405, 2
        %v407 = vadd.f32 %v405, %v406
        %v408 = vrot.slane %v407, 1
        %v409 = vadd.f32 %v407, %v408
        %v410 = vmul.f32 %v409, 0.125
        %v411 = vadd.f32 %v410, 1e-05
        %v412 = vrsqrt.pop %v411
        %v413 = vmul.f32 %v412, %v411
        %v414 = vmul.f32 %v413, %v412
        %v415 = vmul.f32 0.5, %v414
        %v416 = vsub.f32 1.5, %v415
        %v417 = vmul.f32 %v412, %v416
        %vm418 = vweird.f32 %v411
        %vm419 = vweird.f32 %v412
        %vm420 = vmor %vm418, %vm419
        %v421 = vsel %vm420, %v412, %v417
        %v422 = vmul.f32 %v347, %v421
        %v423 = vperm.slane %v422, 1
        %v424 = vmul.f32 %v402, %v423
        %v425 = vperm.slane %v347, 2
        %v426 = vadd.f32 %v424, %v425
        %427 = vst [vmem:[%s306] sm:$0xff] %v426
        %s428 = sand.u32 %s132, 1
        %s429 = scalar_lea.sflag [#allocation4], %s428
        %s430 = sand.u32 %s132, 1
        %s431 = smul.addr %s430, 8
        %s432 = scalar_lea.vmem [#allocation10], %s431
        // Predicated region
        $region53: #{tpu_custom_call.1} parent=35 // pred_check
          %p433 = pneg %p142
        $region54: #{tpu_custom_call.1} parent=35 // pred_check_branch
          %435 = sbr.rel (%p433) target = $region56
        $region55: #{tpu_custom_call.1} parent=35 // pred_region
          %437 = vsyncadd %s429, 0
          %s438 = smul.addr %s25, 8
          %s439 = scalar_lea.hbm %s4, %s438
          %s441 = sshll.u32 %s432, 4
          %s442 = int_to_ptr.vmem [resolvable:$true] %s441
          %s443 = sshll.u32 %s439, 4
          %s444 = int_to_ptr.hbm [resolvable:$true] %s443
          %446 = dma.vmem_to_hbm [thread:$0]  %s442, 128, %s444, %s429
        $region56: #{tpu_custom_call.1} parent=35 // pred_fallthru
          _
      $region36: #{tpu_custom_call.1} parent=5 // pred_fallthru
        _
      %p447 = scmp.le.s32.totalorder 2, %s20
      // Predicated region
      $region57: #{tpu_custom_call.1} parent=5 // pred_check
        %p448 = pneg %p447
      $region58: #{tpu_custom_call.1} parent=5 // pred_check_branch
        %450 = sbr.rel (%p448) target = $region60
      $region59: #{tpu_custom_call.1} parent=5 // pred_region
        %s451 = ssub.s32 %s20, 2
        // Predicated region
        $region61: #{tpu_custom_call.1} parent=59 // pred_check
          %p452 = pneg %p148
        $region62: #{tpu_custom_call.1} parent=59 // pred_check_branch
          %454 = sbr.rel (%p452) target = $region64
        $region63: #{tpu_custom_call.1} parent=59 // pred_region
          %s455 = sand.u32 %s133, 1
          %s456 = scalar_lea.sflag [#allocation4], %s455
          %s457 = sand.u32 %s133, 1
          %s458 = smul.addr %s457, 8
          %s459 = scalar_lea.vmem [#allocation10], %s458
          %461 = dma.done %s456, 128
        $region64: #{tpu_custom_call.1} parent=59 // pred_fallthru
          _
      $region60: #{tpu_custom_call.1} parent=5 // pred_fallthru
        _
    $region6: #{tpu_custom_call.1} parent=1 // loop_footer
      %s24 = sadd.s32 1, %s20
    $region7: #{tpu_custom_call.1} parent=1 // loop_footer_branch
      %19 = sbr.rel target = $region3
    $region8: #{tpu_custom_call.1} parent=1 // loop_exit
      _
    %462 = vsyncpa [#allocation3], 1
    %s463 = scalar_lea.sflag [#allocation3], 1
    %464 = vsyncpa %s463, 1
    %465 = vsyncpa [#allocation6], 1
    %s466 = scalar_lea.sflag [#allocation6], 1
    %467 = vsyncpa %s466, 1
    %468 = vsyncpa [#allocation9], 1
    %s469 = scalar_lea.sflag [#allocation9], 1
    %470 = vsyncpa %s469, 1
    %471 = vsyncpa [#allocation4], 1
    %s472 = scalar_lea.sflag [#allocation4], 1
    %473 = vsyncpa %s472, 1

</llo_original>
